<compile_context>
chip_gen: v7x
topology: tpu7x:2x2x1
jax: 0.10.0
libtpu: 0.0.40
codegen_flags: <defaults>
</compile_context>

<pallas_src>
import functools

import jax
import jax.numpy as jnp
from jax import lax
from jax.experimental import pallas as pl
from jax.experimental.pallas import tpu as pltpu


def _global_attention_kernel(lens_ref,       # SMEM [B] int32 (scalar prefetch)
                             q_ref,          # VMEM (tT, D)
                             mem_ref,        # VMEM (S, D)
                             w_in_ref,       # VMEM (D, D)   = W_in^T
                             w_out_c_ref,    # VMEM (D, D)   = W_out[:, :D]^T
                             w_out_q_ref,    # VMEM (D, D)   = W_out[:, D:]^T
                             attn_h_ref,     # VMEM (tT, D)  output
                             align_ref,      # VMEM (tT, S)  output
                             *,
                             approx_reciprocal: bool):
    b = pl.program_id(0)

    # Feed MXU operands in their native dtype (bf16 inputs stay bf16 on the
    # MXU -> full v6e/v7x matmul rate); accumulate in f32 and keep the
    # softmax / tanh path in f32.
    in_dtype = q_ref.dtype
    q = q_ref[...]                            # (tT, D)
    mem = mem_ref[...]                        # (S, D)

    # score(): linear_in then bmm(query, memory^T).  Contract on the last dim
    # of both operands (NT form) so no (S, D) transpose is materialized.
    q_proj = jnp.dot(q, w_in_ref[...],
                     preferred_element_type=jnp.float32)             # (tT, D) f32
    scores = lax.dot_general(q_proj.astype(in_dtype), mem,
                             (((1,), (1,)), ((), ())),
                             preferred_element_type=jnp.float32)     # (tT, S) f32

    # sequence mask: source positions >= memory_lengths[b] -> -inf
    # (matches masked_fill_(-inf) + softmax; a fully-masked row yields NaN,
    #  exactly like the PyTorch reference).
    length = lens_ref[b]
    col = lax.broadcasted_iota(jnp.int32, scores.shape, 1)
    scores = jnp.where(col < length, scores, -jnp.inf)

    # softmax over the source dimension.  The (tT, 1) reciprocal replaces a
    # (tT, S)-wide divide; approx=True routes it to the EUP slot.
    m = jnp.max(scores, axis=-1, keepdims=True)
    p = jnp.exp(scores - m)
    denom = jnp.sum(p, axis=-1, keepdims=True)
    attn = p * pl.reciprocal(denom, approx=approx_reciprocal)        # (tT, S)
    align_ref[...] = attn.astype(align_ref.dtype)

    # context vector c = attn @ memory
    c = jnp.dot(attn.astype(in_dtype), mem,
                preferred_element_type=jnp.float32)                  # (tT, D)

    # linear_out(concat([c, q])) == c @ W_out[:, :D]^T + q @ W_out[:, D:]^T
    out = jnp.dot(c.astype(in_dtype), w_out_c_ref[...],
                  preferred_element_type=jnp.float32)
    out = out + jnp.dot(q, w_out_q_ref[...],
                        preferred_element_type=jnp.float32)
    out = jnp.tanh(out)                                              # 'general' -> tanh
    attn_h_ref[...] = out.astype(attn_h_ref.dtype)


def _pick_tile_t(T, S, D, itemsize, budget_bytes):
    """Largest multiple-of-8 T-tile whose per-grid-step VMEM fits the budget."""
    # Resident per step (approx.): double-buffered memory tile + the three
    # (double-buffered) weight tiles, plus per-query-row pipeline buffers for
    # q / attn_h / align and ~4 live f32 temporaries inside the softmax.
    fixed = 2 * S * D * itemsize + 6 * D * D * itemsize
    per_row = 2 * (2 * D + S) * itemsize + 4 * (S + D) * 4
    tile = max(8, (budget_bytes - fixed) // per_row)
    if tile >= T:
        return T
    return max(8, (tile // 8) * 8)


@functools.partial(
    jax.jit,
    static_argnames=("align_dtype", "approx_reciprocal", "tile_t",
                     "vmem_budget_bytes"))
def global_attention(query, memory_bank, memory_lengths, w_in, w_out,
                     *, align_dtype=jnp.float32, approx_reciprocal=False,
                     tile_t=None, vmem_budget_bytes=20 * 1024 * 1024):
    """GlobalAttention forward, attn_type='general'.

    query:          [B, T, D]
    memory_bank:    [B, S, D]
    memory_lengths: [B] int
    w_in:           [D, D]   (torch nn.Linear(dim, dim, bias=False).weight)
    w_out:          [D, 2D]  (torch nn.Linear(2*dim, dim, bias=False).weight)

    align_dtype:        dtype of the returned align_vectors (jnp.bfloat16
                        halves the dominant B*T*S HBM writeback if tolerated).
    approx_reciprocal:  use the EUP approximate reciprocal in the softmax.
    tile_t:             override for the T tile; default sized so per-step
                        VMEM stays under `vmem_budget_bytes` (conservative for
                        v7x's smaller VMEM).

    Returns (attn_h [B,T,D], align_vectors [B,T,S]).
    """
    B, T, D = query.shape
    _, S, _ = memory_bank.shape

    tT = tile_t if tile_t is not None else _pick_tile_t(
        T, S, D, query.dtype.itemsize, vmem_budget_bytes)
    num_t = pl.cdiv(T, tT)

    # y = x @ W^T  -> pass transposed weights so the kernel does plain x @ W.
    w_in_t = w_in.T                    # (D, D)
    w_out_c = w_out[:, :D].T           # (D, D), acts on context c
    w_out_q = w_out[:, D:].T           # (D, D), acts on query

    # NOTE: the weight index_maps are constant across the grid, so the
    # pipeline skips their re-DMA after the first step; on jax versions that
    # support it, pipeline_mode=pl.Buffered(1) would also drop the second
    # buffer (3*D*D*itemsize of VMEM).
    def weight_spec():
        return pl.BlockSpec((D, D), lambda b, t, lens: (0, 0))

    grid_spec = pltpu.PrefetchScalarGridSpec(
        num_scalar_prefetch=1,
        grid=(B, num_t),
        in_specs=[
            pl.BlockSpec((None, tT, D), lambda b, t, lens: (b, t, 0)),  # query
            pl.BlockSpec((None, S, D), lambda b, t, lens: (b, 0, 0)),   # memory
            weight_spec(),                                              # w_in^T
            weight_spec(),                                              # w_out_c
            weight_spec(),                                              # w_out_q
        ],
        out_specs=[
            pl.BlockSpec((None, tT, D), lambda b, t, lens: (b, t, 0)),  # attn_h
            pl.BlockSpec((None, tT, S), lambda b, t, lens: (b, t, 0)),  # align
        ],
    )

    kernel = functools.partial(_global_attention_kernel,
                               approx_reciprocal=approx_reciprocal)

    attn_h, align = pl.pallas_call(
        kernel,
        grid_spec=grid_spec,
        out_shape=(
            jax.ShapeDtypeStruct((B, T, D), query.dtype),
            jax.ShapeDtypeStruct((B, T, S), align_dtype),
        ),
        compiler_params=pltpu.CompilerParams(
            dimension_semantics=("parallel", "parallel"),
            vmem_limit_bytes=32 * 1024 * 1024),
    )(memory_lengths.astype(jnp.int32), query, memory_bank,
      w_in_t, w_out_c, w_out_q)
    return attn_h, align


def _reference(query, memory_bank, memory_lengths, w_in, w_out):
    """Pure-JAX replica of the PyTorch forward (attn_type='general')."""
    B, T, D = query.shape
    _, S, _ = memory_bank.shape
    qp = jnp.einsum('btd,ed->bte', query, w_in)           # linear_in
    align = jnp.einsum('btd,bsd->bts', qp, memory_bank)
    mask = (jnp.arange(S)[None, :] < memory_lengths[:, None])[:, None, :]
    align = jnp.where(mask, align, -jnp.inf)
    align_vectors = jax.nn.softmax(align, axis=-1)
    c = jnp.einsum('bts,bsd->btd', align_vectors, memory_bank)
    concat = jnp.concatenate([c, query], axis=-1)
    attn_h = jnp.tanh(jnp.einsum('btk,dk->btd', concat, w_out))
    return attn_h, align_vectors


if __name__ == "__main__":
    B, T, S, D = 2, 8, 8, 32

    key = jax.random.PRNGKey(0)
    k1, k2, k3, k4 = jax.random.split(key, 4)

    query = jax.random.normal(k1, (B, T, D), dtype=jnp.float32)
    memory_bank = jax.random.normal(k2, (B, S, D), dtype=jnp.float32)
    memory_lengths = jnp.array([S, S - 3], dtype=jnp.int32)

    # Deterministic parameter init (uniform, torch-Linear-style scale).
    bound_in = 1.0 / jnp.sqrt(D)
    bound_out = 1.0 / jnp.sqrt(2 * D)
    w_in = jax.random.uniform(k3, (D, D), jnp.float32, -bound_in, bound_in)
    w_out = jax.random.uniform(k4, (D, 2 * D), jnp.float32, -bound_out, bound_out)

    attn_h, align = global_attention(query, memory_bank, memory_lengths,
                                     w_in, w_out)
    jax.block_until_ready((attn_h, align))

    ref_h, ref_a = _reference(query, memory_bank, memory_lengths, w_in, w_out)
    assert jnp.allclose(attn_h, ref_h, atol=1e-5, rtol=1e-5)
    assert jnp.allclose(align, ref_a, atol=1e-5, rtol=1e-5)

    print("KERNEL_OK")
</pallas_src>

<mosaic_0001>
module attributes {stable_mosaic.version = 11 : i64} {
  func.func @_global_attention_kernel(%arg0: i32, %arg1: i32, %arg2: memref<2xi32, #tpu.memory_space<smem>>, %arg3: memref<1x8x32xf32, #tpu.memory_space<vmem>>, %arg4: memref<1x8x32xf32, #tpu.memory_space<vmem>>, %arg5: memref<32x32xf32, #tpu.memory_space<vmem>>, %arg6: memref<32x32xf32, #tpu.memory_space<vmem>>, %arg7: memref<32x32xf32, #tpu.memory_space<vmem>>, %arg8: memref<1x8x32xf32, #tpu.memory_space<vmem>>, %arg9: memref<1x8x8xf32, #tpu.memory_space<vmem>>) attributes {dimension_semantics = [#tpu.dimension_semantics<parallel>, #tpu.dimension_semantics<parallel>], iteration_bounds = array<i64: 2, 1>, scalar_prefetch = 1 : i64, scratch_operands = 0 : i64, tpu.core_type = #tpu.core_type<tc>, window_params = [{transform_indices = @transform_0, window_bounds = array<i64: 1, 8, 32>}, {transform_indices = @transform_1, window_bounds = array<i64: 1, 8, 32>}, {pipeline_mode = #tpu.pipeline_mode<synchronous>, transform_indices = @transform_2, window_bounds = array<i64: 32, 32>}, {pipeline_mode = #tpu.pipeline_mode<synchronous>, transform_indices = @transform_3, window_bounds = array<i64: 32, 32>}, {pipeline_mode = #tpu.pipeline_mode<synchronous>, transform_indices = @transform_4, window_bounds = array<i64: 32, 32>}, {transform_indices = @transform_5, window_bounds = array<i64: 1, 8, 32>}, {transform_indices = @transform_6, window_bounds = array<i64: 1, 8, 8>}]} {
    %c0 = arith.constant 0 : index
    %c0_0 = arith.constant 0 : index
    %c0_1 = arith.constant 0 : index
    %0 = vector.load %arg3[%c0, %c0_0, %c0_1] : memref<1x8x32xf32, #tpu.memory_space<vmem>>, vector<1x8x32xf32>
    %1 = vector.shape_cast %0 : vector<1x8x32xf32> to vector<8x32xf32>
    %c0_2 = arith.constant 0 : index
    %c0_3 = arith.constant 0 : index
    %c0_4 = arith.constant 0 : index
    %2 = vector.load %arg4[%c0_2, %c0_3, %c0_4] : memref<1x8x32xf32, #tpu.memory_space<vmem>>, vector<1x8x32xf32>
    %3 = vector.shape_cast %2 : vector<1x8x32xf32> to vector<8x32xf32>
    %c0_5 = arith.constant 0 : index
    %c0_6 = arith.constant 0 : index
    %4 = vector.load %arg5[%c0_5, %c0_6] : memref<32x32xf32, #tpu.memory_space<vmem>>, vector<32x32xf32>
    %cst = arith.constant dense<0.000000e+00> : vector<8x32xf32>
    %5 = tpu.matmul %1, %4, %cst {dimension_numbers = #tpu.dot_dimension_numbers<[1], [0], [0], [1], [0, 0, 1, 1], [], []>} : vector<8x32xf32>, vector<32x32xf32>, vector<8x32xf32> -> vector<8x32xf32>
    %cst_7 = arith.constant dense<0.000000e+00> : vector<8x8xf32>
    %6 = tpu.matmul %5, %3, %cst_7 {dimension_numbers = #tpu.dot_dimension_numbers<[1], [1], [0], [0], [0, 0, 1, 0], [], []>} : vector<8x32xf32>, vector<8x32xf32>, vector<8x8xf32> -> vector<8x8xf32>
    %7 = arith.index_cast %arg0 : i32 to index
    %8 = memref.load %arg2[%7] : memref<2xi32, #tpu.memory_space<smem>>
    %9 = tpu.iota {dimensions = array<i32: 1>} : vector<8x8xi32>
    %10 = vector.broadcast %8 : i32 to vector<8x8xi32>
    %11 = arith.cmpi slt, %9, %10 : vector<8x8xi32>
    %cst_8 = arith.constant 0xFF800000 : f32
    %12 = vector.broadcast %cst_8 : f32 to vector<8x8xf32>
    %13 = arith.select %11, %6, %12 : vector<8x8xi1>, vector<8x8xf32>
    %cst_9 = arith.constant dense<0xFF800000> : vector<8xf32>
    %14 = vector.multi_reduction <maximumf>, %13, %cst_9 [1] : vector<8x8xf32> to vector<8xf32>
    %15 = vector.shape_cast %14 : vector<8xf32> to vector<8x1xf32>
    %16 = vector.broadcast %15 : vector<8x1xf32> to vector<8x8xf32>
    %17 = arith.subf %13, %16 : vector<8x8xf32>
    %18 = math.exp %17 : vector<8x8xf32>
    %cst_10 = arith.constant dense<0.000000e+00> : vector<8xf32>
    %19 = vector.multi_reduction <add>, %18, %cst_10 [1] : vector<8x8xf32> to vector<8xf32>
    %20 = vector.shape_cast %19 : vector<8xf32> to vector<8x1xf32>
    %21 = tpu.reciprocal %20 : vector<8x1xf32> -> vector<8x1xf32>
    %22 = vector.broadcast %21 : vector<8x1xf32> to vector<8x8xf32>
    %23 = arith.mulf %18, %22 : vector<8x8xf32>
    %c0_11 = arith.constant 0 : index
    %c0_12 = arith.constant 0 : index
    %c0_13 = arith.constant 0 : index
    %24 = vector.load %arg9[%c0_11, %c0_12, %c0_13] : memref<1x8x8xf32, #tpu.memory_space<vmem>>, vector<1x8x8xf32>
    %25 = vector.shape_cast %24 : vector<1x8x8xf32> to vector<8x8xf32>
    %26 = vector.shape_cast %23 : vector<8x8xf32> to vector<1x8x8xf32>
    tpu.vector_store %arg9[%c0_11, %c0_12, %c0_13], %26 {strides = array<i32>} : memref<1x8x8xf32, #tpu.memory_space<vmem>>, vector<1x8x8xf32>,
    %cst_14 = arith.constant dense<0.000000e+00> : vector<8x32xf32>
    %27 = tpu.matmul %23, %3, %cst_14 {dimension_numbers = #tpu.dot_dimension_numbers<[1], [0], [0], [1], [0, 0, 1, 1], [], []>} : vector<8x8xf32>, vector<8x32xf32>, vector<8x32xf32> -> vector<8x32xf32>
    %c0_15 = arith.constant 0 : index
    %c0_16 = arith.constant 0 : index
    %28 = vector.load %arg6[%c0_15, %c0_16] : memref<32x32xf32, #tpu.memory_space<vmem>>, vector<32x32xf32>
    %cst_17 = arith.constant dense<0.000000e+00> : vector<8x32xf32>
    %29 = tpu.matmul %27, %28, %cst_17 {dimension_numbers = #tpu.dot_dimension_numbers<[1], [0], [0], [1], [0, 0, 1, 1], [], []>} : vector<8x32xf32>, vector<32x32xf32>, vector<8x32xf32> -> vector<8x32xf32>
    %c0_18 = arith.constant 0 : index
    %c0_19 = arith.constant 0 : index
    %30 = vector.load %arg7[%c0_18, %c0_19] : memref<32x32xf32, #tpu.memory_space<vmem>>, vector<32x32xf32>
    %cst_20 = arith.constant dense<0.000000e+00> : vector<8x32xf32>
    %31 = tpu.matmul %1, %30, %cst_20 {dimension_numbers = #tpu.dot_dimension_numbers<[1], [0], [0], [1], [0, 0, 1, 1], [], []>} : vector<8x32xf32>, vector<32x32xf32>, vector<8x32xf32> -> vector<8x32xf32>
    %32 = arith.addf %29, %31 : vector<8x32xf32>
    %33 = math.tanh %32 : vector<8x32xf32>
    %c0_21 = arith.constant 0 : index
    %c0_22 = arith.constant 0 : index
    %c0_23 = arith.constant 0 : index
    %34 = vector.load %arg8[%c0_21, %c0_22, %c0_23] : memref<1x8x32xf32, #tpu.memory_space<vmem>>, vector<1x8x32xf32>
    %35 = vector.shape_cast %34 : vector<1x8x32xf32> to vector<8x32xf32>
    %36 = vector.shape_cast %33 : vector<8x32xf32> to vector<1x8x32xf32>
    tpu.vector_store %arg8[%c0_21, %c0_22, %c0_23], %36 {strides = array<i32>} : memref<1x8x32xf32, #tpu.memory_space<vmem>>, vector<1x8x32xf32>,
    return
  }
  func.func @transform_0(%arg0: i32, %arg1: i32, %arg2: memref<2xi32, #tpu.memory_space<smem>>) -> (i32, i32, i32) {
    %c0_i32 = arith.constant 0 : i32
    %c0_i32_0 = arith.constant 0 : i32
    return %arg0, %arg1, %c0_i32 : i32, i32, i32
  }
  func.func @transform_1(%arg0: i32, %arg1: i32, %arg2: memref<2xi32, #tpu.memory_space<smem>>) -> (i32, i32, i32) {
    %c0_i32 = arith.constant 0 : i32
    %c0_i32_0 = arith.constant 0 : i32
    %c0_i32_1 = arith.constant 0 : i32
    return %arg0, %c0_i32, %c0_i32_0 : i32, i32, i32
  }
  func.func @transform_2(%arg0: i32, %arg1: i32, %arg2: memref<2xi32, #tpu.memory_space<smem>>) -> (i32, i32) {
    %c0_i32 = arith.constant 0 : i32
    %c0_i32_0 = arith.constant 0 : i32
    %c0_i32_1 = arith.constant 0 : i32
    return %c0_i32, %c0_i32_0 : i32, i32
  }
  func.func @transform_3(%arg0: i32, %arg1: i32, %arg2: memref<2xi32, #tpu.memory_space<smem>>) -> (i32, i32) {
    %c0_i32 = arith.constant 0 : i32
    %c0_i32_0 = arith.constant 0 : i32
    %c0_i32_1 = arith.constant 0 : i32
    return %c0_i32, %c0_i32_0 : i32, i32
  }
  func.func @transform_4(%arg0: i32, %arg1: i32, %arg2: memref<2xi32, #tpu.memory_space<smem>>) -> (i32, i32) {
    %c0_i32 = arith.constant 0 : i32
    %c0_i32_0 = arith.constant 0 : i32
    %c0_i32_1 = arith.constant 0 : i32
    return %c0_i32, %c0_i32_0 : i32, i32
  }
  func.func @transform_5(%arg0: i32, %arg1: i32, %arg2: memref<2xi32, #tpu.memory_space<smem>>) -> (i32, i32, i32) {
    %c0_i32 = arith.constant 0 : i32
    %c0_i32_0 = arith.constant 0 : i32
    return %arg0, %arg1, %c0_i32 : i32, i32, i32
  }
  func.func @transform_6(%arg0: i32, %arg1: i32, %arg2: memref<2xi32, #tpu.memory_space<smem>>) -> (i32, i32, i32) {
    %c0_i32 = arith.constant 0 : i32
    %c0_i32_0 = arith.constant 0 : i32
    return %arg0, %arg1, %c0_i32 : i32, i32, i32
  }
}

</mosaic_0001>

<llo_original>
// kernel: global_attention.1
$region0: #{global_attention.1}
  #allocation0 [shape = 'u32[]', space=smem, size = 0x4, offset = 0x4, fixed_abs, tag = 'smem constant byte address 0x4 - core index']
  #allocation1 [shape = 'u32[144,128]{1,0:T(1,128)}', space=vmem, size = 0x12000, scoped, tag = 'internal scratch']
  #allocation2 [shape = 's32[1]{0}', space=sflag, size = 0x4, scoped, tag = 'scoped memory for global_attention.1']
  #allocation3 [shape = 'u8[512]{0}', space=smem, size = 0x200, scoped, tag = 'prefetched SMEM operand 0']
  %s0 = inlined_call_operand.vmem [shape: s32[2], index: 0, kind: input, shape index: {}]
  %s1 = inlined_call_operand.vmem [shape: f32[2,8,32], index: 1, kind: input, shape index: {}]
  %s2 = inlined_call_operand.vmem [shape: f32[2,8,32], index: 2, kind: input, shape index: {}]
  %s3 = inlined_call_operand.vmem [shape: f32[32,32], index: 3, kind: input, shape index: {}]
  %s4 = inlined_call_operand.vmem [shape: f32[32,32], index: 4, kind: input, shape index: {}]
  %s5 = inlined_call_operand.vmem [shape: f32[32,32], index: 5, kind: input, shape index: {}]
  %s6 = inlined_call_operand.hbm [shape: f32[2,8,32], index: 6, kind: output, shape index: {0}]
  %s7 = inlined_call_operand.hbm [shape: f32[2,8,8], index: 7, kind: output, shape index: {1}]
  %8 = xla_tuple %s6, %s7
  %s9 = sld [smem:[#allocation0]]
  $region61: #{global_attention.1} parent=0
    _
  %s11 = ssub.s32 1, %s9
  %s12 = scalar_select 0, %s11, %s9
  %s13 = sshll.u32 %s0, 4
  %s14 = int_to_ptr.vmem [resolvable:$true] %s13
  %16 = dma.vmem_to_smem %s14, 16, [#allocation3], [#allocation2]
  %17 = dma.done [#allocation2], 16
  %18 = sfence
  $region1: #{global_attention.1} parent=0
    #allocation4 [shape = 'u8[8192]{0}', space=vmem, size = 0x2000, scoped, tag = 'output window, operand 0']
    #allocation5 [shape = 's32[2]{0}', space=sflag, size = 0x8, scoped, tag = 'scoped memory for global_attention.1']
    #allocation6 [shape = 'u8[8192]{0}', space=vmem, size = 0x2000, scoped, tag = 'output window, operand 1']
    #allocation7 [shape = 's32[2]{0}', space=sflag, size = 0x8, scoped, tag = 'scoped memory for global_attention.1']
    %19 = vsyncpa [#allocation5], 0
    %s20 = scalar_lea.sflag [#allocation5], 1
    %21 = vsyncpa %s20, 0
    %22 = vsyncpa [#allocation7], 0
    %s23 = scalar_lea.sflag [#allocation7], 1
    %24 = vsyncpa %s23, 0
    loop: start=0, step=1, limit=4
    $region2: #{global_attention.1} parent=1 // loop_pre_header
      _
    $region3: #{global_attention.1} parent=1 // loop_header
      %s26 = sphi 0, %s30
      %p27 = scmp.ge.s32.totalorder %s26, 4
      %s33 = sphi 0, %s45
      %s34 = sphi 0, %s41
      %s35 = sphi 0, %s33
      %s36 = sphi 0, %s34
      %s37 = sphi 0, %s35
      %s38 = sphi 0, %s36
      %s50 = sphi 0, %s52
      %s53 = sphi 0, %s50
      %s54 = sphi 0, %s53
      %s70 = sphi 0, %s54
      %s76 = sphi 0, %s78
      %s79 = sphi 0, %s76
      %s80 = sphi 0, %s79
      %s96 = sphi 0, %s80
      %s100 = sphi 0, %s100
      %s102 = sphi 0, %s100
      %s103 = sphi 0, %s102
      %s117 = sphi 0, %s103
      %s121 = sphi 0, %s121
      %s123 = sphi 0, %s121
      %s124 = sphi 0, %s123
      %s138 = sphi 0, %s124
      %s142 = sphi 0, %s142
      %s144 = sphi 0, %s142
      %s145 = sphi 0, %s144
      %s159 = sphi 0, %s145
      %s167 = sphi 0, %s169
      %s170 = sphi 0, %s167
      %s171 = sphi 0, %s170
      %s187 = sphi 0, %s171
      %s195 = sphi 0, %s197
      %s198 = sphi 0, %s195
      %s199 = sphi 0, %s198
      %s215 = sphi 0, %s199
    $region4: #{global_attention.1} parent=1 // loop_header_branch
      %29 = sbr.rel (%p27) target = $region8
    $region5: #{global_attention.1} parent=1 // loop_body
      %s31 = ssub.s32 %s26, 1
      %s32 = ssub.s32 %s26, 2
      %s39 = sadd.s32 1, %s34
      %p40 = scmp.ge.s32.totalorder %s39, 1
      %s41 = scalar_select %p40, 0, %s39
      %s42 = sadd.s32 1, %s33
      %s43 = scalar_select %p40, %s42, %s33
      %p44 = scmp.ge.s32.totalorder %s43, 2
      %s45 = scalar_select %p44, 0, %s43
      %s46 = ssub.s32 %s33, %s45
      %s47 = ssub.s32 %s34, %s41
      %s48 = sor.u32 %s46, %s47
      %p49 = scmp.eq.s32.totalorder %s48, 0
      %s51 = sadd.s32 %s50, 1
      %s52 = scalar_select %p49, %s50, %s51
      %p55 = pneg %p49
      %p56 = scmp.eq.s32.totalorder %s26, 1
      %p57 = por %p55, %p56
      %p58 = scmp.ne.s32.totalorder %s50, %s53
      %p59 = scmp.eq.s32.totalorder %s26, 0
      %p60 = por %p58, %p59
      %p61 = scmp.ne.s32.totalorder %s50, %s53
      %p62 = scmp.eq.s32.totalorder %s31, 1
      %p63 = por %p61, %p62
      %p64 = scmp.ne.s32.totalorder %s53, %s54
      %p65 = scmp.eq.s32.totalorder %s31, 0
      %p66 = por %p64, %p65
      %p67 = scmp.ne.s32.totalorder %s53, %s54
      %p68 = scmp.eq.s32.totalorder %s32, 1
      %p69 = por %p67, %p68
      %p71 = scmp.ne.s32.totalorder %s54, %s70
      %p72 = scmp.eq.s32.totalorder %s32, 0
      %p73 = por %p71, %p72
      %s74 = ssub.s32 %s33, %s45
      %p75 = scmp.eq.s32.totalorder %s74, 0
      %s77 = sadd.s32 %s76, 1
      %s78 = scalar_select %p75, %s76, %s77
      %p81 = pneg %p75
      %p82 = scmp.eq.s32.totalorder %s26, 1
      %p83 = por %p81, %p82
      %p84 = scmp.ne.s32.totalorder %s76, %s79
      %p85 = scmp.eq.s32.totalorder %s26, 0
      %p86 = por %p84, %p85
      %p87 = scmp.ne.s32.totalorder %s76, %s79
      %p88 = scmp.eq.s32.totalorder %s31, 1
      %p89 = por %p87, %p88
      %p90 = scmp.ne.s32.totalorder %s79, %s80
      %p91 = scmp.eq.s32.totalorder %s31, 0
      %p92 = por %p90, %p91
      %p93 = scmp.ne.s32.totalorder %s79, %s80
      %p94 = scmp.eq.s32.totalorder %s32, 1
      %p95 = por %p93, %p94
      %p97 = scmp.ne.s32.totalorder %s80, %s96
      %p98 = scmp.eq.s32.totalorder %s32, 0
      %p99 = por %p97, %p98
      %s101 = sadd.s32 %s100, 1
      %p104 = scmp.eq.s32.totalorder %s26, 1
      %p105 = scmp.ne.s32.totalorder %s100, %s102
      %p106 = scmp.eq.s32.totalorder %s26, 0
      %p107 = por %p105, %p106
      %p108 = scmp.ne.s32.totalorder %s100, %s102
      %p109 = scmp.eq.s32.totalorder %s31, 1
      %p110 = por %p108, %p109
      %p111 = scmp.ne.s32.totalorder %s102, %s103
      %p112 = scmp.eq.s32.totalorder %s31, 0
      %p113 = por %p111, %p112
      %p114 = scmp.ne.s32.totalorder %s102, %s103
      %p115 = scmp.eq.s32.totalorder %s32, 1
      %p116 = por %p114, %p115
      %p118 = scmp.ne.s32.totalorder %s103, %s117
      %p119 = scmp.eq.s32.totalorder %s32, 0
      %p120 = por %p118, %p119
      %s122 = sadd.s32 %s121, 1
      %p125 = scmp.eq.s32.totalorder %s26, 1
      %p126 = scmp.ne.s32.totalorder %s121, %s123
      %p127 = scmp.eq.s32.totalorder %s26, 0
      %p128 = por %p126, %p127
      %p129 = scmp.ne.s32.totalorder %s121, %s123
      %p130 = scmp.eq.s32.totalorder %s31, 1
      %p131 = por %p129, %p130
      %p132 = scmp.ne.s32.totalorder %s123, %s124
      %p133 = scmp.eq.s32.totalorder %s31, 0
      %p134 = por %p132, %p133
      %p135 = scmp.ne.s32.totalorder %s123, %s124
      %p136 = scmp.eq.s32.totalorder %s32, 1
      %p137 = por %p135, %p136
      %p139 = scmp.ne.s32.totalorder %s124, %s138
      %p140 = scmp.eq.s32.totalorder %s32, 0
      %p141 = por %p139, %p140
      %s143 = sadd.s32 %s142, 1
      %p146 = scmp.eq.s32.totalorder %s26, 1
      %p147 = scmp.ne.s32.totalorder %s142, %s144
      %p148 = scmp.eq.s32.totalorder %s26, 0
      %p149 = por %p147, %p148
      %p150 = scmp.ne.s32.totalorder %s142, %s144
      %p151 = scmp.eq.s32.totalorder %s31, 1
      %p152 = por %p150, %p151
      %p153 = scmp.ne.s32.totalorder %s144, %s145
      %p154 = scmp.eq.s32.totalorder %s31, 0
      %p155 = por %p153, %p154
      %p156 = scmp.ne.s32.totalorder %s144, %s145
      %p157 = scmp.eq.s32.totalorder %s32, 1
      %p158 = por %p156, %p157
      %p160 = scmp.ne.s32.totalorder %s145, %s159
      %p161 = scmp.eq.s32.totalorder %s32, 0
      %p162 = por %p160, %p161
      %s163 = ssub.s32 %s33, %s45
      %s164 = ssub.s32 %s34, %s41
      %s165 = sor.u32 %s163, %s164
      %p166 = scmp.eq.s32.totalorder %s165, 0
      %s168 = sadd.s32 %s167, 1
      %s169 = scalar_select %p166, %s167, %s168
      %p172 = pneg %p166
      %p173 = scmp.eq.s32.totalorder %s26, 1
      %p174 = por %p172, %p173
      %p175 = scmp.ne.s32.totalorder %s167, %s170
      %p176 = scmp.eq.s32.totalorder %s26, 0
      %p177 = por %p175, %p176
      %p178 = scmp.ne.s32.totalorder %s167, %s170
      %p179 = scmp.eq.s32.totalorder %s31, 1
      %p180 = por %p178, %p179
      %p181 = scmp.ne.s32.totalorder %s170, %s171
      %p182 = scmp.eq.s32.totalorder %s31, 0
      %p183 = por %p181, %p182
      %p184 = scmp.ne.s32.totalorder %s170, %s171
      %p185 = scmp.eq.s32.totalorder %s32, 1
      %p186 = por %p184, %p185
      %p188 = scmp.ne.s32.totalorder %s171, %s187
      %p189 = scmp.eq.s32.totalorder %s32, 0
      %p190 = por %p188, %p189
      %s191 = ssub.s32 %s33, %s45
      %s192 = ssub.s32 %s34, %s41
      %s193 = sor.u32 %s191, %s192
      %p194 = scmp.eq.s32.totalorder %s193, 0
      %s196 = sadd.s32 %s195, 1
      %s197 = scalar_select %p194, %s195, %s196
      %p200 = pneg %p194
      %p201 = scmp.eq.s32.totalorder %s26, 1
      %p202 = por %p200, %p201
      %p203 = scmp.ne.s32.totalorder %s195, %s198
      %p204 = scmp.eq.s32.totalorder %s26, 0
      %p205 = por %p203, %p204
      %p206 = scmp.ne.s32.totalorder %s195, %s198
      %p207 = scmp.eq.s32.totalorder %s31, 1
      %p208 = por %p206, %p207
      %p209 = scmp.ne.s32.totalorder %s198, %s199
      %p210 = scmp.eq.s32.totalorder %s31, 0
      %p211 = por %p209, %p210
      %p212 = scmp.ne.s32.totalorder %s198, %s199
      %p213 = scmp.eq.s32.totalorder %s32, 1
      %p214 = por %p212, %p213
      %p216 = scmp.ne.s32.totalorder %s199, %s215
      %p217 = scmp.eq.s32.totalorder %s32, 0
      %p218 = por %p216, %p217
      %p219 = scmp.le.s32.totalorder 1, %s26
      %p220 = scmp.lt.s32.totalorder %s26, 3
      %p221 = pnand %p219, %p220
      %p222 = pneg %p221
      // Predicated region
      $region9: #{global_attention.1} parent=5 // pred_check
        _
      $region10: #{global_attention.1} parent=5 // pred_check_branch
        %224 = sbr.rel (%p221) target = $region12
      $region11: #{global_attention.1} parent=5 // pred_region
        %s225 = ssub.s32 %s26, 1
        // Predicated region
        $region13: #{global_attention.1} parent=11 // pred_check
          %p226 = pneg %p113
        $region14: #{global_attention.1} parent=11 // pred_check_branch
          %228 = sbr.rel (%p226) target = $region16
        $region15: #{global_attention.1} parent=11 // pred_region
          _
        $region16: #{global_attention.1} parent=11 // pred_fallthru
          _
        // Predicated region
        $region17: #{global_attention.1} parent=11 // pred_check
          %p229 = pneg %p134
        $region18: #{global_attention.1} parent=11 // pred_check_branch
          %231 = sbr.rel (%p229) target = $region20
        $region19: #{global_attention.1} parent=11 // pred_region
          _
        $region20: #{global_attention.1} parent=11 // pred_fallthru
          _
        // Predicated region
        $region21: #{global_attention.1} parent=11 // pred_check
          %p232 = pneg %p155
        $region22: #{global_attention.1} parent=11 // pred_check_branch
          %234 = sbr.rel (%p232) target = $region24
        $region23: #{global_attention.1} parent=11 // pred_region
          _
        $region24: #{global_attention.1} parent=11 // pred_fallthru
          _
      $region12: #{global_attention.1} parent=5 // pred_fallthru
        _
      %p235 = scmp.lt.s32.totalorder %s26, 2
      // Predicated region
      $region25: #{global_attention.1} parent=5 // pred_check
        %p236 = pneg %p235
      $region26: #{global_attention.1} parent=5 // pred_check_branch
        %238 = sbr.rel (%p236) target = $region28
      $region27: #{global_attention.1} parent=5 // pred_region
        // Predicated region
        $region29: #{global_attention.1} parent=27 // pred_check
          %p239 = pneg %p60
        $region30: #{global_attention.1} parent=27 // pred_check_branch
          %241 = sbr.rel (%p239) target = $region32
        $region31: #{global_attention.1} parent=27 // pred_region
          %p242 = scmp.lt.s32.totalorder %s33, 1
          %s243 = scalar_select %p242, %s33, 1
          %p244 = scmp.lt.s32.totalorder %s34, 0
          %s245 = scalar_select %p244, %s34, 0
          %s246 = sadd.s32 %s245, %s243
          %s247 = smul.addr %s246, 8
          %s248 = scalar_lea.vmem %s1, %s247
        $region32: #{global_attention.1} parent=27 // pred_fallthru
          _
        // Predicated region
        $region33: #{global_attention.1} parent=27 // pred_check
          %p249 = pneg %p86
        $region34: #{global_attention.1} parent=27 // pred_check_branch
          %251 = sbr.rel (%p249) target = $region36
        $region35: #{global_attention.1} parent=27 // pred_region
          %p252 = scmp.lt.s32.totalorder %s33, 1
          %s253 = scalar_select %p252, %s33, 1
          %s254 = smul.addr %s253, 8
          %s255 = scalar_lea.vmem %s2, %s254
        $region36: #{global_attention.1} parent=27 // pred_fallthru
          _
      $region28: #{global_attention.1} parent=5 // pred_fallthru
        _
      %p256 = scmp.le.s32.totalorder 1, %s26
      %p257 = scmp.lt.s32.totalorder %s26, 3
      %p258 = pnand %p256, %p257
      %p259 = pneg %p258
      // Predicated region
      $region37: #{global_attention.1} parent=5 // pred_check
        _
      $region38: #{global_attention.1} parent=5 // pred_check_branch
        %261 = sbr.rel (%p258) target = $region40
      $region39: #{global_attention.1} parent=5 // pred_region
        %s262 = ssub.s32 %s26, 1
        %p263 = scmp.lt.s32.totalorder %s35, 1
        %s264 = scalar_select %p263, %s35, 1
        %p265 = scmp.lt.s32.totalorder %s36, 0
        %s266 = scalar_select %p265, %s36, 0
        %s267 = sadd.s32 %s266, %s264
        %s268 = smul.addr %s267, 8
        %s269 = scalar_lea.vmem %s1, %s268
        %p270 = pneg %p66
        %p271 = pneg %p63
        %p272 = scmp.lt.s32.totalorder %s35, 1
        %s273 = scalar_select %p272, %s35, 1
        %s274 = smul.addr %s273, 8
        %s275 = scalar_lea.vmem %s2, %s274
        %p276 = pneg %p92
        %p277 = pneg %p89
        %p278 = pneg %p113
        %p279 = pneg %p110
        %p280 = pneg %p134
        %p281 = pneg %p131
        %p282 = pneg %p155
        %p283 = pneg %p152
        %p284 = pneg %p183
        %p285 = pneg %p180
        %s286 = sand.u32 %s170, 1
        %s287 = scalar_lea.sflag [#allocation5], %s286
        %s288 = sand.u32 %s170, 1
        %s289 = smul.addr %s288, 8
        %s290 = scalar_lea.vmem [#allocation4], %s289
        %p291 = pneg %p211
        %p292 = pneg %p208
        %s293 = sand.u32 %s198, 1
        %s294 = scalar_lea.sflag [#allocation7], %s293
        %s295 = sand.u32 %s198, 1
        %s296 = smul.addr %s295, 8
        %s297 = scalar_lea.vmem [#allocation6], %s296
        %p298 = scmp.lt.s32.totalorder %s35, 1
        %s299 = scalar_select %p298, %s35, 1
        %p300 = scmp.lt.s32.totalorder %s36, 0
        %s301 = scalar_select %p300, %s36, 0
        %s302 = sadd.s32 %s301, %s299
        %s303 = smul.addr %s302, 8
        %s304 = scalar_lea.vmem %s1, %s303
        %p305 = scmp.lt.s32.totalorder %s35, 1
        %s306 = scalar_select %p305, %s35, 1
        %s307 = smul.addr %s306, 8
        %s308 = scalar_lea.vmem %s2, %s307
        %v309 = vld [vmem:[%s304] sm:$0xff]
        %v310 = vld [vmem:[%s308] sm:$0xff]
        %v311 = vld [vmem:[%s3] sm:$0xff]
        %v312 = vld [vmem:[%s3 + $0x8] sm:$0xff]
        %v313 = vld [vmem:[%s3 + $0x10] sm:$0xff]
        %v314 = vld [vmem:[%s3 + $0x18] sm:$0xff]
        %vm315 = vcmask 261120
        %v317 = vsel %vm315, %v309, 0
        %319 = vmatprep.subr.mxu0 0.0
        %320 = vmatpush1.msra.mxu0 %v311
        %321 = vmatprep.subr.mxu0 0.0
        %322 = vmatpush1.msra.mxu0 %v312
        %323 = vmatprep.subr.mxu0 0.0
        %324 = vmatpush1.msra.mxu0 %v313
        %325 = vmatprep.subr.mxu0 0.0
        %326 = vmatpush1.msra.mxu0 %v314
        %327 = vmatprep.subr.mxu0 0.0
        %328 = vmatpush1.msra.mxu0 0.0
        %329 = vmatprep.subr.mxu0 0.0
        %330 = vmatpush1.msra.mxu0 0.0
        %331 = vmatprep.subr.mxu0 0.0
        %332 = vmatpush1.msra.mxu0 0.0
        %333 = vmatprep.subr.mxu0 0.0
        %334 = vmatpush1.msra.mxu0 0.0
        %335 = vmatprep.subr.mxu0 0.0
        %336 = vmatpush1.msra.mxu0 0.0
        %337 = vmatprep.subr.mxu0 0.0
        %338 = vmatpush1.msra.mxu0 0.0
        %339 = vmatprep.subr.mxu0 0.0
        %340 = vmatpush1.msra.mxu0 0.0
        %341 = vmatprep.subr.mxu0 0.0
        %342 = vmatpush1.msra.mxu0 0.0
        %343 = vmatprep.subr.mxu0 0.0
        %344 = vmatpush1.msra.mxu0 0.0
        %345 = vmatprep.subr.mxu0 0.0
        %346 = vmatpush1.msra.mxu0 0.0
        %347 = vmatprep.subr.mxu0 0.0
        %348 = vmatpush1.msra.mxu0 0.0
        %349 = vmatprep.subr.mxu0 0.0
        %350 = vmatpush1.msra.mxu0 0.0
        %351 = vmatprep.subr.mxu0 0.0
        %352 = vmatpush1.msra.mxu0 0.0
        %353 = vmatprep.subr.mxu0 0.0
        %354 = vmatpush1.msra.mxu0 0.0
        %355 = vmatprep.subr.mxu0 0.0
        %356 = vmatpush1.msra.mxu0 0.0
        %357 = vmatprep.subr.mxu0 0.0
        %358 = vmatpush1.msra.mxu0 0.0
        %359 = vmatprep.subr.mxu0 0.0
        %360 = vmatpush1.msra.mxu0 0.0
        %361 = vmatprep.subr.mxu0 0.0
        %362 = vmatpush1.msra.mxu0 0.0
        %363 = vmatprep.subr.mxu0 0.0
        %364 = vmatpush1.msra.mxu0 0.0
        %365 = vmatprep.subr.mxu0 0.0
        %366 = vmatpush1.msra.mxu0 0.0
        %367 = vmatprep.subr.mxu0 0.0
        %368 = vmatpush1.msra.mxu0 0.0
        %369 = vmatprep.subr.mxu0 0.0
        %370 = vmatpush1.msra.mxu0 0.0
        %371 = vmatprep.subr.mxu0 0.0
        %372 = vmatpush1.msra.mxu0 0.0
        %373 = vmatprep.subr.mxu0 0.0
        %374 = vmatpush1.msra.mxu0 0.0
        %375 = vmatprep.subr.mxu0 0.0
        %376 = vmatpush1.msra.mxu0 0.0
        %377 = vmatprep.subr.mxu0 0.0
        %378 = vmatpush1.msra.mxu0 0.0
        %379 = vmatprep.subr.mxu0 0.0
        %380 = vmatpush1.msra.mxu0 0.0
        %381 = vmatprep.subr.mxu0 0.0
        %382 = vmatpush1.msra.mxu0 0.0
        %383 = vmatprep.mubr.f32.mxu0 0.0
        %384 = vmatmul.mubr.f32.gmra.mrb[0].mxu0 %v317
        %v385 = vpop.f32.mrb[0].mxu0
        %v386 = vadd.f32 0.0, %v385
        %v387 = vpop.f32.mrb[0].mxu0
        %388 = vdwg.mxu0
        %v390 = vsel %vm315, %v386, 0
        %v393 = vsel %vm315, %v310, 0
        %395 = vmatprep.subr.mxu0 0.0
        %396 = vmatpush1.xpose.msra.mxu0 %v393
        %397 = vmatprep.subr.mxu0 0.0
        %398 = vmatpush1.xpose.msra.mxu0 0.0
        %399 = vmatprep.subr.mxu0 0.0
        %400 = vmatpush1.xpose.msra.mxu0 0.0
        %401 = vmatprep.subr.mxu0 0.0
        %402 = vmatpush1.xpose.msra.mxu0 0.0
        %403 = vmatprep.subr.mxu0 0.0
        %404 = vmatpush1.xpose.msra.mxu0 0.0
        %405 = vmatprep.subr.mxu0 0.0
        %406 = vmatpush1.xpose.msra.mxu0 0.0
        %407 = vmatprep.subr.mxu0 0.0
        %408 = vmatpush1.xpose.msra.mxu0 0.0
        %409 = vmatprep.subr.mxu0 0.0
        %410 = vmatpush1.xpose.msra.mxu0 0.0
        %411 = vmatprep.subr.mxu0 0.0
        %412 = vmatpush1.xpose.msra.mxu0 0.0
        %413 = vmatprep.subr.mxu0 0.0
        %414 = vmatpush1.xpose.msra.mxu0 0.0
        %415 = vmatprep.subr.mxu0 0.0
        %416 = vmatpush1.xpose.msra.mxu0 0.0
        %417 = vmatprep.subr.mxu0 0.0
        %418 = vmatpush1.xpose.msra.mxu0 0.0
        %419 = vmatprep.subr.mxu0 0.0
        %420 = vmatpush1.xpose.msra.mxu0 0.0
        %421 = vmatprep.subr.mxu0 0.0
        %422 = vmatpush1.xpose.msra.mxu0 0.0
        %423 = vmatprep.subr.mxu0 0.0
        %424 = vmatpush1.xpose.msra.mxu0 0.0
        %425 = vmatprep.subr.mxu0 0.0
        %426 = vmatpush1.xpose.msra.mxu0 0.0
        %427 = vmatprep.subr.mxu0 0.0
        %428 = vmatpush1.xpose.msra.mxu0 0.0
        %429 = vmatprep.subr.mxu0 0.0
        %430 = vmatpush1.xpose.msra.mxu0 0.0
        %431 = vmatprep.subr.mxu0 0.0
        %432 = vmatpush1.xpose.msra.mxu0 0.0
        %433 = vmatprep.subr.mxu0 0.0
        %434 = vmatpush1.xpose.msra.mxu0 0.0
        %435 = vmatprep.subr.mxu0 0.0
        %436 = vmatpush1.xpose.msra.mxu0 0.0
        %437 = vmatprep.subr.mxu0 0.0
        %438 = vmatpush1.xpose.msra.mxu0 0.0
        %439 = vmatprep.subr.mxu0 0.0
        %440 = vmatpush1.xpose.msra.mxu0 0.0
        %441 = vmatprep.subr.mxu0 0.0
        %442 = vmatpush1.xpose.msra.mxu0 0.0
        %443 = vmatprep.subr.mxu0 0.0
        %444 = vmatpush1.xpose.msra.mxu0 0.0
        %445 = vmatprep.subr.mxu0 0.0
        %446 = vmatpush1.xpose.msra.mxu0 0.0
        %447 = vmatprep.subr.mxu0 0.0
        %448 = vmatpush1.xpose.msra.mxu0 0.0
        %449 = vmatprep.subr.mxu0 0.0
        %450 = vmatpush1.xpose.msra.mxu0 0.0
        %451 = vmatprep.subr.mxu0 0.0
        %452 = vmatpush1.xpose.msra.mxu0 0.0
        %453 = vmatprep.subr.mxu0 0.0
        %454 = vmatpush1.xpose.msra.mxu0 0.0
        %455 = vmatprep.subr.mxu0 0.0
        %456 = vmatpush1.xpose.msra.mxu0 0.0
        %457 = vmatprep.subr.mxu0 0.0
        %458 = vmatpush1.xpose.msra.mxu0 0.0
        %459 = vmatprep.mubr.f32.mxu0 0.0
        %460 = vmatmul.mubr.f32.gmra.mrb[0].mxu0 %v390
        %v461 = vpop.f32.mrb[0].mxu0
        %v462 = vadd.f32 0.0, %v461
        %v463 = vpop.f32.mrb[0].mxu0
        %464 = vdwg.mxu0
        %s465 = sld [smem:[#allocation3 + %s35]]
        %v466 = vlaneseq
        %v467 = vand.u32 %v466, 127
        %v468 = vstv %s465
        %vm469 = vcmp.lt.s32.totalorder %v467, %v468
        %v470 = vsel %vm469, %v462, -inf
        %vm471 = vcmask 64512
        %v472 = vsel %vm471, %v470, -inf
        %473 = vmax.xlane.f32.xlu0 %v472
        %v474 = vpop.xlane.xlu0 %473
        %v475 = vsub.f32 %v470, %v474
        %v476 = vmul.f32 %v475, 1.442695
        %v477 = vpow.pop %v476
        %v478 = vsel %vm471, %v477, 0.0
        %479 = vadd.xlane.f32.xlu0 %v478
        %v480 = vpop.xlane.xlu0 %479
        %v481 = vrcp.pop %v480
        %v482 = vmul.f32 %v477, %v481
        %483 = vst.msk [vmem:[%s297] sm:$0xff] %vm471, %v482
        %v485 = vsel %vm471, %v482, 0
        %487 = vmatprep.subr.mxu0 0.0
        %488 = vmatpush1.msra.mxu0 %v310
        %489 = vmatprep.subr.mxu0 0.0
        %490 = vmatpush1.msra.mxu0 0.0
        %491 = vmatprep.subr.mxu0 0.0
        %492 = vmatpush1.msra.mxu0 0.0
        %493 = vmatprep.subr.mxu0 0.0
        %494 = vmatpush1.msra.mxu0 0.0
        %495 = vmatprep.subr.mxu0 0.0
        %496 = vmatpush1.msra.mxu0 0.0
        %497 = vmatprep.subr.mxu0 0.0
        %498 = vmatpush1.msra.mxu0 0.0
        %499 = vmatprep.subr.mxu0 0.0
        %500 = vmatpush1.msra.mxu0 0.0
        %501 = vmatprep.subr.mxu0 0.0
        %502 = vmatpush1.msra.mxu0 0.0
        %503 = vmatprep.subr.mxu0 0.0
        %504 = vmatpush1.msra.mxu0 0.0
        %505 = vmatprep.subr.mxu0 0.0
        %506 = vmatpush1.msra.mxu0 0.0
        %507 = vmatprep.subr.mxu0 0.0
        %508 = vmatpush1.msra.mxu0 0.0
        %509 = vmatprep.subr.mxu0 0.0
        %510 = vmatpush1.msra.mxu0 0.0
        %511 = vmatprep.subr.mxu0 0.0
        %512 = vmatpush1.msra.mxu0 0.0
        %513 = vmatprep.subr.mxu0 0.0
        %514 = vmatpush1.msra.mxu0 0.0
        %515 = vmatprep.subr.mxu0 0.0
        %516 = vmatpush1.msra.mxu0 0.0
        %517 = vmatprep.subr.mxu0 0.0
        %518 = vmatpush1.msra.mxu0 0.0
        %519 = vmatprep.subr.mxu0 0.0
        %520 = vmatpush1.msra.mxu0 0.0
        %521 = vmatprep.subr.mxu0 0.0
        %522 = vmatpush1.msra.mxu0 0.0
        %523 = vmatprep.subr.mxu0 0.0
        %524 = vmatpush1.msra.mxu0 0.0
        %525 = vmatprep.subr.mxu0 0.0
        %526 = vmatpush1.msra.mxu0 0.0
        %527 = vmatprep.subr.mxu0 0.0
        %528 = vmatpush1.msra.mxu0 0.0
        %529 = vmatprep.subr.mxu0 0.0
        %530 = vmatpush1.msra.mxu0 0.0
        %531 = vmatprep.subr.mxu0 0.0
        %532 = vmatpush1.msra.mxu0 0.0
        %533 = vmatprep.subr.mxu0 0.0
        %534 = vmatpush1.msra.mxu0 0.0
        %535 = vmatprep.subr.mxu0 0.0
        %536 = vmatpush1.msra.mxu0 0.0
        %537 = vmatprep.subr.mxu0 0.0
        %538 = vmatpush1.msra.mxu0 0.0
        %539 = vmatprep.subr.mxu0 0.0
        %540 = vmatpush1.msra.mxu0 0.0
        %541 = vmatprep.subr.mxu0 0.0
        %542 = vmatpush1.msra.mxu0 0.0
        %543 = vmatprep.subr.mxu0 0.0
        %544 = vmatpush1.msra.mxu0 0.0
        %545 = vmatprep.subr.mxu0 0.0
        %546 = vmatpush1.msra.mxu0 0.0
        %547 = vmatprep.subr.mxu0 0.0
        %548 = vmatpush1.msra.mxu0 0.0
        %549 = vmatprep.subr.mxu0 0.0
        %550 = vmatpush1.msra.mxu0 0.0
        %551 = vmatprep.mubr.f32.mxu0 0.0
        %552 = vmatmul.mubr.f32.gmra.mrb[0].mxu0 %v485
        %v553 = vpop.f32.mrb[0].mxu0
        %v554 = vadd.f32 0.0, %v553
        %v555 = vpop.f32.mrb[0].mxu0
        %556 = vdwg.mxu0
        %v557 = vld [vmem:[%s4] sm:$0xff]
        %v558 = vld [vmem:[%s4 + $0x8] sm:$0xff]
        %v559 = vld [vmem:[%s4 + $0x10] sm:$0xff]
        %v560 = vld [vmem:[%s4 + $0x18] sm:$0xff]
        %v561 = vld [vmem:[%s5] sm:$0xff]
        %v562 = vld [vmem:[%s5 + $0x8] sm:$0xff]
        %v563 = vld [vmem:[%s5 + $0x10] sm:$0xff]
        %v564 = vld [vmem:[%s5 + $0x18] sm:$0xff]
        %565 = vmatprep.subr.mxu0 0.0
        %566 = vmatpush1.msra.mxu0 %v561
        %567 = vmatprep.subr.mxu0 0.0
        %568 = vmatpush1.msra.mxu0 %v562
        %569 = vmatprep.subr.mxu0 0.0
        %570 = vmatpush1.msra.mxu0 %v563
        %571 = vmatprep.subr.mxu0 0.0
        %572 = vmatpush1.msra.mxu0 %v564
        %573 = vmatprep.subr.mxu0 0.0
        %574 = vmatpush1.msra.mxu0 0.0
        %575 = vmatprep.subr.mxu0 0.0
        %576 = vmatpush1.msra.mxu0 0.0
        %577 = vmatprep.subr.mxu0 0.0
        %578 = vmatpush1.msra.mxu0 0.0
        %579 = vmatprep.subr.mxu0 0.0
        %580 = vmatpush1.msra.mxu0 0.0
        %581 = vmatprep.subr.mxu0 0.0
        %582 = vmatpush1.msra.mxu0 0.0
        %583 = vmatprep.subr.mxu0 0.0
        %584 = vmatpush1.msra.mxu0 0.0
        %585 = vmatprep.subr.mxu0 0.0
        %586 = vmatpush1.msra.mxu0 0.0
        %587 = vmatprep.subr.mxu0 0.0
        %588 = vmatpush1.msra.mxu0 0.0
        %589 = vmatprep.subr.mxu0 0.0
        %590 = vmatpush1.msra.mxu0 0.0
        %591 = vmatprep.subr.mxu0 0.0
        %592 = vmatpush1.msra.mxu0 0.0
        %593 = vmatprep.subr.mxu0 0.0
        %594 = vmatpush1.msra.mxu0 0.0
        %595 = vmatprep.subr.mxu0 0.0
        %596 = vmatpush1.msra.mxu0 0.0
        %597 = vmatprep.subr.mxu0 0.0
        %598 = vmatpush1.msra.mxu0 0.0
        %599 = vmatprep.subr.mxu0 0.0
        %600 = vmatpush1.msra.mxu0 0.0
        %601 = vmatprep.subr.mxu0 0.0
        %602 = vmatpush1.msra.mxu0 0.0
        %603 = vmatprep.subr.mxu0 0.0
        %604 = vmatpush1.msra.mxu0 0.0
        %605 = vmatprep.subr.mxu0 0.0
        %606 = vmatpush1.msra.mxu0 0.0
        %607 = vmatprep.subr.mxu0 0.0
        %608 = vmatpush1.msra.mxu0 0.0
        %609 = vmatprep.subr.mxu0 0.0
        %610 = vmatpush1.msra.mxu0 0.0
        %611 = vmatprep.subr.mxu0 0.0
        %612 = vmatpush1.msra.mxu0 0.0
        %613 = vmatprep.subr.mxu0 0.0
        %614 = vmatpush1.msra.mxu0 0.0
        %615 = vmatprep.subr.mxu0 0.0
        %616 = vmatpush1.msra.mxu0 0.0
        %617 = vmatprep.subr.mxu0 0.0
        %618 = vmatpush1.msra.mxu0 0.0
        %619 = vmatprep.subr.mxu0 0.0
        %620 = vmatpush1.msra.mxu0 0.0
        %621 = vmatprep.subr.mxu0 0.0
        %622 = vmatpush1.msra.mxu0 0.0
        %623 = vmatprep.subr.mxu0 0.0
        %624 = vmatpush1.msra.mxu0 0.0
        %625 = vmatprep.subr.mxu0 0.0
        %626 = vmatpush1.msra.mxu0 0.0
        %627 = vmatprep.subr.mxu0 0.0
        %628 = vmatpush1.msra.mxu0 0.0
        %629 = vmatprep.mubr.f32.mxu0 0.0
        %630 = vmatmul.mubr.f32.gmra.mrb[0].mxu0 %v317
        %v631 = vpop.f32.mrb[0].mxu0
        %v632 = vadd.f32 0.0, %v631
        %v633 = vpop.f32.mrb[0].mxu0
        %634 = vdwg.mxu0
        %v636 = vsel %vm315, %v554, 0
        %638 = vmatprep.subr.mxu0 0.0
        %639 = vmatpush1.msra.mxu0 %v557
        %640 = vmatprep.subr.mxu0 0.0
        %641 = vmatpush1.msra.mxu0 %v558
        %642 = vmatprep.subr.mxu0 0.0
        %643 = vmatpush1.msra.mxu0 %v559
        %644 = vmatprep.subr.mxu0 0.0
        %645 = vmatpush1.msra.mxu0 %v560
        %646 = vmatprep.subr.mxu0 0.0
        %647 = vmatpush1.msra.mxu0 0.0
        %648 = vmatprep.subr.mxu0 0.0
        %649 = vmatpush1.msra.mxu0 0.0
        %650 = vmatprep.subr.mxu0 0.0
        %651 = vmatpush1.msra.mxu0 0.0
        %652 = vmatprep.subr.mxu0 0.0
        %653 = vmatpush1.msra.mxu0 0.0
        %654 = vmatprep.subr.mxu0 0.0
        %655 = vmatpush1.msra.mxu0 0.0
        %656 = vmatprep.subr.mxu0 0.0
        %657 = vmatpush1.msra.mxu0 0.0
        %658 = vmatprep.subr.mxu0 0.0
        %659 = vmatpush1.msra.mxu0 0.0
        %660 = vmatprep.subr.mxu0 0.0
        %661 = vmatpush1.msra.mxu0 0.0
        %662 = vmatprep.subr.mxu0 0.0
        %663 = vmatpush1.msra.mxu0 0.0
        %664 = vmatprep.subr.mxu0 0.0
        %665 = vmatpush1.msra.mxu0 0.0
        %666 = vmatprep.subr.mxu0 0.0
        %667 = vmatpush1.msra.mxu0 0.0
        %668 = vmatprep.subr.mxu0 0.0
        %669 = vmatpush1.msra.mxu0 0.0
        %670 = vmatprep.subr.mxu0 0.0
        %671 = vmatpush1.msra.mxu0 0.0
        %672 = vmatprep.subr.mxu0 0.0
        %673 = vmatpush1.msra.mxu0 0.0
        %674 = vmatprep.subr.mxu0 0.0
        %675 = vmatpush1.msra.mxu0 0.0
        %676 = vmatprep.subr.mxu0 0.0
        %677 = vmatpush1.msra.mxu0 0.0
        %678 = vmatprep.subr.mxu0 0.0
        %679 = vmatpush1.msra.mxu0 0.0
        %680 = vmatprep.subr.mxu0 0.0
        %681 = vmatpush1.msra.mxu0 0.0
        %682 = vmatprep.subr.mxu0 0.0
        %683 = vmatpush1.msra.mxu0 0.0
        %684 = vmatprep.subr.mxu0 0.0
        %685 = vmatpush1.msra.mxu0 0.0
        %686 = vmatprep.subr.mxu0 0.0
        %687 = vmatpush1.msra.mxu0 0.0
        %688 = vmatprep.subr.mxu0 0.0
        %689 = vmatpush1.msra.mxu0 0.0
        %690 = vmatprep.subr.mxu0 0.0
        %691 = vmatpush1.msra.mxu0 0.0
        %692 = vmatprep.subr.mxu0 0.0
        %693 = vmatpush1.msra.mxu0 0.0
        %694 = vmatprep.subr.mxu0 0.0
        %695 = vmatpush1.msra.mxu0 0.0
        %696 = vmatprep.subr.mxu0 0.0
        %697 = vmatpush1.msra.mxu0 0.0
        %698 = vmatprep.subr.mxu0 0.0
        %699 = vmatpush1.msra.mxu0 0.0
        %700 = vmatprep.subr.mxu0 0.0
        %701 = vmatpush1.msra.mxu0 0.0
        %702 = vmatprep.mubr.f32.mxu0 0.0
        %703 = vmatmul.mubr.f32.gmra.mrb[0].mxu0 %v636
        %v704 = vpop.f32.mrb[0].mxu0
        %v705 = vadd.f32 %v632, %v704
        %v706 = vpop.f32.mrb[0].mxu0
        %707 = vdwg.mxu0
        %v708 = vtanh.pop %v705
        %709 = vst.msk [vmem:[%s290] sm:$0xff] %vm315, %v708
        %s710 = sand.u32 %s170, 1
        %s711 = scalar_lea.sflag [#allocation5], %s710
        %s712 = sand.u32 %s170, 1
        %s713 = smul.addr %s712, 8
        %s714 = scalar_lea.vmem [#allocation4], %s713
        %s715 = sand.u32 %s198, 1
        %s716 = scalar_lea.sflag [#allocation7], %s715
        %s717 = sand.u32 %s198, 1
        %s718 = smul.addr %s717, 8
        %s719 = scalar_lea.vmem [#allocation6], %s718
        // Predicated region
        $region41: #{global_attention.1} parent=39 // pred_check
          %p720 = pneg %p180
        $region42: #{global_attention.1} parent=39 // pred_check_branch
          %722 = sbr.rel (%p720) target = $region44
        $region43: #{global_attention.1} parent=39 // pred_region
          %s724 = ssub.s32 128, 128
          %725 = vsyncadd %s711, %s724
          %s726 = sadd.s32 %s36, %s35
          %s727 = smul.addr %s726, 128
          %s728 = scalar_lea.hbm %s6, %s727
          %s730 = sshll.u32 %s714, 4
          %s731 = int_to_ptr.vmem [resolvable:$true] %s730
          %733 = dma.vmem_to_hbm [thread:$0]  %s731, 128, %s728, %s711
        $region44: #{global_attention.1} parent=39 // pred_fallthru
          _
        // Predicated region
        $region45: #{global_attention.1} parent=39 // pred_check
          %p734 = pneg %p208
        $region46: #{global_attention.1} parent=39 // pred_check_branch
          %736 = sbr.rel (%p734) target = $region48
        $region47: #{global_attention.1} parent=39 // pred_region
          %s738 = ssub.s32 128, 128
          %739 = vsyncadd %s716, %s738
          %s740 = sadd.s32 %s36, %s35
          %s741 = smul.addr %s740, 128
          %s742 = scalar_lea.hbm %s7, %s741
          %s744 = sshll.u32 %s719, 4
          %s745 = int_to_ptr.vmem [resolvable:$true] %s744
          %747 = dma.vmem_to_hbm [thread:$0]  %s745, 128, %s742, %s716
        $region48: #{global_attention.1} parent=39 // pred_fallthru
          _
      $region40: #{global_attention.1} parent=5 // pred_fallthru
        _
      %p748 = scmp.le.s32.totalorder 2, %s26
      // Predicated region
      $region49: #{global_attention.1} parent=5 // pred_check
        %p749 = pneg %p748
      $region50: #{global_attention.1} parent=5 // pred_check_branch
        %751 = sbr.rel (%p749) target = $region52
      $region51: #{global_attention.1} parent=5 // pred_region
        %s752 = ssub.s32 %s26, 2
        // Predicated region
        $region53: #{global_attention.1} parent=51 // pred_check
          %p753 = pneg %p186
        $region54: #{global_attention.1} parent=51 // pred_check_branch
          %755 = sbr.rel (%p753) target = $region56
        $region55: #{global_attention.1} parent=51 // pred_region
          %s756 = sand.u32 %s171, 1
          %s757 = scalar_lea.sflag [#allocation5], %s756
          %s758 = sand.u32 %s171, 1
          %s759 = smul.addr %s758, 8
          %s760 = scalar_lea.vmem [#allocation4], %s759
          %761 = dma.done %s757, 128
        $region56: #{global_attention.1} parent=51 // pred_fallthru
          _
        // Predicated region
        $region57: #{global_attention.1} parent=51 // pred_check
          %p762 = pneg %p214
        $region58: #{global_attention.1} parent=51 // pred_check_branch
          %764 = sbr.rel (%p762) target = $region60
        $region59: #{global_attention.1} parent=51 // pred_region
          %s765 = sand.u32 %s199, 1
          %s766 = scalar_lea.sflag [#allocation7], %s765
          %s767 = sand.u32 %s199, 1
          %s768 = smul.addr %s767, 8
          %s769 = scalar_lea.vmem [#allocation6], %s768
          %770 = dma.done %s766, 128
        $region60: #{global_attention.1} parent=51 // pred_fallthru
          _
      $region52: #{global_attention.1} parent=5 // pred_fallthru
        _
    $region6: #{global_attention.1} parent=1 // loop_footer
      %s30 = sadd.s32 1, %s26
    $region7: #{global_attention.1} parent=1 // loop_footer_branch
      %25 = sbr.rel target = $region3
    $region8: #{global_attention.1} parent=1 // loop_exit
      _
    %771 = vsyncpa [#allocation5], 1
    %s772 = scalar_lea.sflag [#allocation5], 1
    %773 = vsyncpa %s772, 1
    %774 = vsyncpa [#allocation7], 1
    %s775 = scalar_lea.sflag [#allocation7], 1
    %776 = vsyncpa %s775, 1

</llo_original>
